<compile_context>
chip_gen: v7x
topology: tpu7x:2x2x1
jax: 0.10.0
libtpu: 0.0.40
codegen_flags: <defaults>
</compile_context>

<pallas_src>
import jax
import jax.numpy as jnp
from jax.experimental import pallas as pl
from jax.experimental.pallas import tpu as pltpu


def _round_up(n, m):
    return ((n + m - 1) // m) * m


def _mlp_kernel(x_ref, w1_ref, b1_ref, w2_ref, b2_ref, o_ref):
    # x (TB, IN) @ w1t (IN, Hp) -> (TB, Hp)   == x @ W1^T   (MXU, f32 acc)
    h = jnp.dot(x_ref[...], w1_ref[...], preferred_element_type=jnp.float32)
    h = jnp.maximum(h + b1_ref[...], 0.0)          # bias + ReLU (VPU)
    # h (TB, Hp) @ w2t (Hp, OUT) -> (TB, OUT)  == h @ W2^T
    z = jnp.dot(h, w2_ref[...], preferred_element_type=jnp.float32)
    o_ref[...] = jax.nn.sigmoid(z + b2_ref[...]).astype(o_ref.dtype)


def prepare_params(w1, b1, w2, b2):
    """One-time weight prep (outside the jitted forward).

    Transposes to the contraction-friendly layouts (IN, Hp) / (Hp, OUT) and
    zero-pads the hidden dim H -> multiple of 128 (lane granularity).  The
    padded hidden units are 0 after ReLU and contribute nothing to the second
    matmul, so semantics are exact.
    """
    H, IN = w1.shape
    OUT = w2.shape[0]
    Hp = _round_up(H, 128)
    w1t = jnp.zeros((IN, Hp), w1.dtype).at[:, :H].set(w1.T)
    b1p = jnp.zeros((1, Hp), b1.dtype).at[0, :H].set(b1)
    w2t = jnp.zeros((Hp, OUT), w2.dtype).at[:H, :].set(w2.T)
    b2p = b2.reshape(1, OUT)
    return w1t, b1p, w2t, b2p


@jax.jit
def netcheck_forward_prepped(x, w1t, b1p, w2t, b2p):
    """x: (B, IN); params already prepped by prepare_params()."""
    B, IN = x.shape
    Hp = w1t.shape[1]
    OUT = w2t.shape[1]

    # Batch tile: multiple of 8 (f32 sublane), capped at 2048 rows.  Using
    # cdiv(B, 2) as the target keeps the grid length >= 2 whenever B is big
    # enough, so both v7x TensorCores get work; tiny B collapses to one
    # (partial) tile, which Pallas masks on write.
    TB = max(8, min(2048, _round_up(pl.cdiv(B, 2), 8)))
    grid = (pl.cdiv(B, TB),)

    flops = 2 * B * IN * Hp + 2 * B * Hp * OUT
    bytes_accessed = 4 * (B * IN + B * OUT + IN * Hp + Hp * OUT + Hp + OUT)
    cost = pl.CostEstimate(flops=flops,
                           transcendentals=B * OUT,       # sigmoid exp
                           bytes_accessed=bytes_accessed)

    out = pl.pallas_call(
        _mlp_kernel,
        out_shape=jax.ShapeDtypeStruct((B, OUT), x.dtype),
        grid_spec=pltpu.PrefetchScalarGridSpec(
            num_scalar_prefetch=0,
            grid=grid,
            in_specs=[
                # x tiled over the batch grid (partial last tile handled by
                # Pallas: OOB rows read as padding, their writes masked).
                pl.BlockSpec((TB, IN), lambda i: (i, 0)),
                # Weights & biases: full-array blocks, constant index_map ->
                # resident in VMEM across batch tiles (no re-DMA).
                pl.BlockSpec((IN, Hp), lambda i: (0, 0)),
                pl.BlockSpec((1, Hp), lambda i: (0, 0)),
                pl.BlockSpec((Hp, OUT), lambda i: (0, 0)),
                pl.BlockSpec((1, OUT), lambda i: (0, 0)),
            ],
            out_specs=pl.BlockSpec((TB, OUT), lambda i: (i, 0)),
        ),
        compiler_params=pltpu.CompilerParams(
            dimension_semantics=("parallel",)),
        cost_estimate=cost,
    )(x, w1t, b1p, w2t, b2p)

    return out


def netcheck_forward(x, w1, b1, w2, b2):
    """Convenience wrapper: x (B, IN); w1 (H, IN); b1 (H,); w2 (OUT, H); b2 (OUT,)."""
    return netcheck_forward_prepped(x, *prepare_params(w1, b1, w2, b2))


def _torch_linear_init(key, out_features, in_features, dtype=jnp.float32):
    """Deterministic init matching torch.nn.Linear default:
    U(-1/sqrt(fan_in), 1/sqrt(fan_in)) for both weight and bias."""
    kw, kb = jax.random.split(key)
    bound = 1.0 / jnp.sqrt(jnp.asarray(in_features, dtype))
    w = jax.random.uniform(kw, (out_features, in_features), dtype,
                           minval=-bound, maxval=bound)
    b = jax.random.uniform(kb, (out_features,), dtype,
                           minval=-bound, maxval=bound)
    return w, b


if __name__ == "__main__":
    # Shapes consistent with the module: y_len=8, x_len=16,
    # input_count = output_count = y_len*x_len = 128, hidden_count = 32.
    Y_LEN, X_LEN = 8, 16
    INPUT_COUNT = Y_LEN * X_LEN
    HIDDEN_COUNT = 32
    OUTPUT_COUNT = Y_LEN * X_LEN
    BATCH = 2

    key = jax.random.PRNGKey(0)
    k_x, k_h, k_o, k_x2 = jax.random.split(key, 4)

    x = jax.random.normal(k_x, (BATCH, INPUT_COUNT), jnp.float32)
    w1, b1 = _torch_linear_init(k_h, HIDDEN_COUNT, INPUT_COUNT)
    w2, b2 = _torch_linear_init(k_o, OUTPUT_COUNT, HIDDEN_COUNT)

    # One-time param prep (transpose + pad), then the jitted forward.
    params = prepare_params(w1, b1, w2, b2)
    params = jax.tree_util.tree_map(jax.block_until_ready, params)

    out = netcheck_forward_prepped(x, *params)
    jax.block_until_ready(out)

    ref = jax.nn.sigmoid(jnp.maximum(x @ w1.T + b1, 0.0) @ w2.T + b2)
    assert out.shape == (BATCH, OUTPUT_COUNT)
    assert jnp.allclose(out, ref, atol=1e-5, rtol=1e-5)

    # Remainder-batch test: B=13 -> two grid steps with a masked partial
    # final tile (covers the no-pad / cdiv-grid path).
    x2 = jax.random.normal(k_x2, (13, INPUT_COUNT), jnp.float32)
    out2 = netcheck_forward_prepped(x2, *params)
    jax.block_until_ready(out2)
    ref2 = jax.nn.sigmoid(jnp.maximum(x2 @ w1.T + b1, 0.0) @ w2.T + b2)
    assert out2.shape == (13, OUTPUT_COUNT)
    assert jnp.allclose(out2, ref2, atol=1e-5, rtol=1e-5)

    # TODO(synk): NetCheck's use_check=True branch (independent check model +
    # host-side equality assert) is data-dependent host control flow; only the
    # default use_check=False forward path is implemented in the kernel.
    print("KERNEL_OK")
</pallas_src>

<mosaic_0001>
module attributes {stable_mosaic.version = 11 : i64} {
  func.func @_mlp_kernel(%arg0: i32, %arg1: memref<8x128xf32, #tpu.memory_space<vmem>>, %arg2: memref<128x128xf32, #tpu.memory_space<vmem>>, %arg3: memref<1x128xf32, #tpu.memory_space<vmem>>, %arg4: memref<128x128xf32, #tpu.memory_space<vmem>>, %arg5: memref<1x128xf32, #tpu.memory_space<vmem>>, %arg6: memref<8x128xf32, #tpu.memory_space<vmem>>) attributes {dimension_semantics = [#tpu.dimension_semantics<parallel>], iteration_bounds = array<i64: 1>, scalar_prefetch = 0 : i64, scratch_operands = 0 : i64, tpu.core_type = #tpu.core_type<tc>, window_params = [{transform_indices = @transform_0, window_bounds = array<i64: 8, 128>}, {pipeline_mode = #tpu.pipeline_mode<synchronous>, transform_indices = @transform_1, window_bounds = array<i64: 128, 128>}, {pipeline_mode = #tpu.pipeline_mode<synchronous>, transform_indices = @transform_2, window_bounds = array<i64: 1, 128>}, {pipeline_mode = #tpu.pipeline_mode<synchronous>, transform_indices = @transform_3, window_bounds = array<i64: 128, 128>}, {pipeline_mode = #tpu.pipeline_mode<synchronous>, transform_indices = @transform_4, window_bounds = array<i64: 1, 128>}, {transform_indices = @transform_5, window_bounds = array<i64: 8, 128>}]} {
    %c0 = arith.constant 0 : index
    %c0_0 = arith.constant 0 : index
    %0 = vector.load %arg1[%c0, %c0_0] : memref<8x128xf32, #tpu.memory_space<vmem>>, vector<8x128xf32>
    %c0_1 = arith.constant 0 : index
    %c0_2 = arith.constant 0 : index
    %1 = vector.load %arg2[%c0_1, %c0_2] : memref<128x128xf32, #tpu.memory_space<vmem>>, vector<128x128xf32>
    %cst = arith.constant dense<0.000000e+00> : vector<8x128xf32>
    %2 = tpu.matmul %0, %1, %cst {dimension_numbers = #tpu.dot_dimension_numbers<[1], [0], [0], [1], [0, 0, 1, 1], [], []>} : vector<8x128xf32>, vector<128x128xf32>, vector<8x128xf32> -> vector<8x128xf32>
    %c0_3 = arith.constant 0 : index
    %c0_4 = arith.constant 0 : index
    %3 = vector.load %arg3[%c0_3, %c0_4] : memref<1x128xf32, #tpu.memory_space<vmem>>, vector<1x128xf32>
    %4 = vector.broadcast %3 : vector<1x128xf32> to vector<8x128xf32>
    %5 = arith.addf %2, %4 : vector<8x128xf32>
    %cst_5 = arith.constant 0.000000e+00 : f32
    %6 = vector.broadcast %cst_5 : f32 to vector<8x128xf32>
    %7 = arith.maximumf %5, %6 : vector<8x128xf32>
    %c0_6 = arith.constant 0 : index
    %c0_7 = arith.constant 0 : index
    %8 = vector.load %arg4[%c0_6, %c0_7] : memref<128x128xf32, #tpu.memory_space<vmem>>, vector<128x128xf32>
    %cst_8 = arith.constant dense<0.000000e+00> : vector<8x128xf32>
    %9 = tpu.matmul %7, %8, %cst_8 {dimension_numbers = #tpu.dot_dimension_numbers<[1], [0], [0], [1], [0, 0, 1, 1], [], []>} : vector<8x128xf32>, vector<128x128xf32>, vector<8x128xf32> -> vector<8x128xf32>
    %c0_9 = arith.constant 0 : index
    %c0_10 = arith.constant 0 : index
    %10 = vector.load %arg5[%c0_9, %c0_10] : memref<1x128xf32, #tpu.memory_space<vmem>>, vector<1x128xf32>
    %11 = vector.broadcast %10 : vector<1x128xf32> to vector<8x128xf32>
    %12 = arith.addf %9, %11 : vector<8x128xf32>
    %13 = arith.negf %12 : vector<8x128xf32>
    %14 = math.exp %13 : vector<8x128xf32>
    %cst_11 = arith.constant 1.000000e+00 : f32
    %15 = vector.broadcast %cst_11 : f32 to vector<8x128xf32>
    %16 = arith.addf %15, %14 : vector<8x128xf32>
    %17 = arith.divf %15, %16 : vector<8x128xf32>
    %c0_12 = arith.constant 0 : index
    %c0_13 = arith.constant 0 : index
    %18 = vector.load %arg6[%c0_12, %c0_13] : memref<8x128xf32, #tpu.memory_space<vmem>>, vector<8x128xf32>
    tpu.vector_store %arg6[%c0_12, %c0_13], %17 {strides = array<i32>} : memref<8x128xf32, #tpu.memory_space<vmem>>, vector<8x128xf32>,
    return
  }
  func.func @transform_0(%arg0: i32) -> (i32, i32) {
    %c0_i32 = arith.constant 0 : i32
    %c0_i32_0 = arith.constant 0 : i32
    return %arg0, %c0_i32 : i32, i32
  }
  func.func @transform_1(%arg0: i32) -> (i32, i32) {
    %c0_i32 = arith.constant 0 : i32
    %c0_i32_0 = arith.constant 0 : i32
    %c0_i32_1 = arith.constant 0 : i32
    return %c0_i32, %c0_i32_0 : i32, i32
  }
  func.func @transform_2(%arg0: i32) -> (i32, i32) {
    %c0_i32 = arith.constant 0 : i32
    %c0_i32_0 = arith.constant 0 : i32
    %c0_i32_1 = arith.constant 0 : i32
    return %c0_i32, %c0_i32_0 : i32, i32
  }
  func.func @transform_3(%arg0: i32) -> (i32, i32) {
    %c0_i32 = arith.constant 0 : i32
    %c0_i32_0 = arith.constant 0 : i32
    %c0_i32_1 = arith.constant 0 : i32
    return %c0_i32, %c0_i32_0 : i32, i32
  }
  func.func @transform_4(%arg0: i32) -> (i32, i32) {
    %c0_i32 = arith.constant 0 : i32
    %c0_i32_0 = arith.constant 0 : i32
    %c0_i32_1 = arith.constant 0 : i32
    return %c0_i32, %c0_i32_0 : i32, i32
  }
  func.func @transform_5(%arg0: i32) -> (i32, i32) {
    %c0_i32 = arith.constant 0 : i32
    %c0_i32_0 = arith.constant 0 : i32
    return %arg0, %c0_i32 : i32, i32
  }
}

</mosaic_0001>

<llo_original>
// kernel: netcheck_forward_prepped.1
$region0: #{netcheck_forward_prepped.1}
  #allocation0 [shape = 'u32[]', space=smem, size = 0x4, offset = 0x4, fixed_abs, tag = 'smem constant byte address 0x4 - core index']
  #allocation1 [shape = 'u32[144,128]{1,0:T(1,128)}', space=vmem, size = 0x12000, scoped, tag = 'internal scratch']
  %s0 = inlined_call_operand.hbm [shape: f32[2,128], index: 0, kind: input, shape index: {}]
  %s1 = inlined_call_operand.hbm [shape: f32[128,128], index: 1, kind: input, shape index: {}]
  %s2 = inlined_call_operand.vmem [shape: f32[1,128], index: 2, kind: input, shape index: {}]
  %s3 = inlined_call_operand.hbm [shape: f32[128,128], index: 3, kind: input, shape index: {}]
  %s4 = inlined_call_operand.vmem [shape: f32[1,128], index: 4, kind: input, shape index: {}]
  %s5 = inlined_call_operand.hbm [shape: f32[2,128], index: 5, kind: output, shape index: {}]
  %s6 = sld [smem:[#allocation0]]
  $region42: #{netcheck_forward_prepped.1} parent=0
    _
  %s8 = ssub.s32 1, %s6
  %s9 = scalar_select 0, %s8, %s6
  $region1: #{netcheck_forward_prepped.1} parent=0
    #allocation2 [shape = 'u8[4096]{0}', space=vmem, size = 0x1000, scoped, tag = 'input window, operand 0, single buffered']
    #allocation3 [shape = 's32[1]{0}', space=sflag, size = 0x4, scoped, tag = 'scoped memory for netcheck_forward_prepped.1']
    #allocation4 [shape = 's32[1]{0}', space=sflag, size = 0x4, scoped, tag = 'scoped memory for netcheck_forward_prepped.1']
    #allocation5 [shape = 'u8[65536]{0}', space=vmem, size = 0x10000, scoped, tag = 'input window, operand 1, single buffered']
    #allocation6 [shape = 's32[1]{0}', space=sflag, size = 0x4, scoped, tag = 'scoped memory for netcheck_forward_prepped.1']
    #allocation7 [shape = 'u8[65536]{0}', space=vmem, size = 0x10000, scoped, tag = 'input window, operand 3, single buffered']
    #allocation8 [shape = 'u8[4096]{0}', space=vmem, size = 0x1000, scoped, tag = 'output window, operand 0, single buffered']
    %10 = vsyncpa [#allocation3], 0
    %11 = vsyncpa [#allocation6], 0
    %12 = vsyncpa [#allocation4], 0
    // Predicated region
    $region2: #{netcheck_forward_prepped.1} parent=1 // pred_check
      _
    $region3: #{netcheck_forward_prepped.1} parent=1 // pred_check_branch
      %14 = sbr.rel (0) target = $region5
    $region4: #{netcheck_forward_prepped.1} parent=1 // pred_region
      %s16 = ssub.s32 128, 32
      %17 = vsyncadd [#allocation3], %s16
      %s18 = sshll.u32 [#allocation2], 4
      %s19 = int_to_ptr.vmem [resolvable:$true] %s18
      %24 = dma.hbm_to_vmem [thread:$0]  %s0, 32, %s19, [#allocation3], 32, 32, 2
    $region5: #{netcheck_forward_prepped.1} parent=1 // pred_fallthru
      _
    // Predicated region
    $region6: #{netcheck_forward_prepped.1} parent=1 // pred_check
      _
    $region7: #{netcheck_forward_prepped.1} parent=1 // pred_check_branch
      %26 = sbr.rel (0) target = $region9
    $region8: #{netcheck_forward_prepped.1} parent=1 // pred_region
      %s28 = ssub.s32 2048, 2048
      %29 = vsyncadd [#allocation6], %s28
      %s30 = sshll.u32 [#allocation5], 4
      %s31 = int_to_ptr.vmem [resolvable:$true] %s30
      %36 = dma.hbm_to_vmem [thread:$0]  %s1, 2048, %s31, [#allocation6], 128, 128, 8
    $region9: #{netcheck_forward_prepped.1} parent=1 // pred_fallthru
      _
    // Predicated region
    $region10: #{netcheck_forward_prepped.1} parent=1 // pred_check
      _
    $region11: #{netcheck_forward_prepped.1} parent=1 // pred_check_branch
      %38 = sbr.rel (0) target = $region13
    $region12: #{netcheck_forward_prepped.1} parent=1 // pred_region
      _
    $region13: #{netcheck_forward_prepped.1} parent=1 // pred_fallthru
      _
    // Predicated region
    $region14: #{netcheck_forward_prepped.1} parent=1 // pred_check
      _
    $region15: #{netcheck_forward_prepped.1} parent=1 // pred_check_branch
      %40 = sbr.rel (0) target = $region17
    $region16: #{netcheck_forward_prepped.1} parent=1 // pred_region
      %s42 = ssub.s32 2048, 2048
      %43 = vsyncadd [#allocation6], %s42
      %s44 = sshll.u32 [#allocation7], 4
      %s45 = int_to_ptr.vmem [resolvable:$true] %s44
      %50 = dma.hbm_to_vmem [thread:$0]  %s3, 2048, %s45, [#allocation6], 128, 128, 8
    $region17: #{netcheck_forward_prepped.1} parent=1 // pred_fallthru
      _
    // Predicated region
    $region18: #{netcheck_forward_prepped.1} parent=1 // pred_check
      _
    $region19: #{netcheck_forward_prepped.1} parent=1 // pred_check_branch
      %52 = sbr.rel (0) target = $region21
    $region20: #{netcheck_forward_prepped.1} parent=1 // pred_region
      _
    $region21: #{netcheck_forward_prepped.1} parent=1 // pred_fallthru
      _
    // Predicated region
    $region22: #{netcheck_forward_prepped.1} parent=1 // pred_check
      _
    $region23: #{netcheck_forward_prepped.1} parent=1 // pred_check_branch
      %54 = sbr.rel (0) target = $region25
    $region24: #{netcheck_forward_prepped.1} parent=1 // pred_region
      %55 = dma.done [#allocation3], 128
    $region25: #{netcheck_forward_prepped.1} parent=1 // pred_fallthru
      _
    // Predicated region
    $region26: #{netcheck_forward_prepped.1} parent=1 // pred_check
      _
    $region27: #{netcheck_forward_prepped.1} parent=1 // pred_check_branch
      %57 = sbr.rel (0) target = $region29
    $region28: #{netcheck_forward_prepped.1} parent=1 // pred_region
      %58 = dma.done [#allocation6], 2048
    $region29: #{netcheck_forward_prepped.1} parent=1 // pred_fallthru
      _
    // Predicated region
    $region30: #{netcheck_forward_prepped.1} parent=1 // pred_check
      _
    $region31: #{netcheck_forward_prepped.1} parent=1 // pred_check_branch
      %60 = sbr.rel (0) target = $region33
    $region32: #{netcheck_forward_prepped.1} parent=1 // pred_region
      %61 = dma.done [#allocation6], 2048
    $region33: #{netcheck_forward_prepped.1} parent=1 // pred_fallthru
      _
    %v62 = vld [vmem:[#allocation2] sm:$0xff]
    %v63 = vld [vmem:[#allocation5] sm:$0xff]
    %v64 = vld [vmem:[#allocation5 + $0x8] sm:$0xff]
    %v65 = vld [vmem:[#allocation5 + $0x10] sm:$0xff]
    %v66 = vld [vmem:[#allocation5 + $0x18] sm:$0xff]
    %v67 = vld [vmem:[#allocation5 + $0x20] sm:$0xff]
    %v68 = vld [vmem:[#allocation5 + $0x28] sm:$0xff]
    %v69 = vld [vmem:[#allocation5 + $0x30] sm:$0xff]
    %v70 = vld [vmem:[#allocation5 + $0x38] sm:$0xff]
    %v71 = vld [vmem:[#allocation5 + $0x40] sm:$0xff]
    %v72 = vld [vmem:[#allocation5 + $0x48] sm:$0xff]
    %v73 = vld [vmem:[#allocation5 + $0x50] sm:$0xff]
    %v74 = vld [vmem:[#allocation5 + $0x58] sm:$0xff]
    %v75 = vld [vmem:[#allocation5 + $0x60] sm:$0xff]
    %v76 = vld [vmem:[#allocation5 + $0x68] sm:$0xff]
    %v77 = vld [vmem:[#allocation5 + $0x70] sm:$0xff]
    %v78 = vld [vmem:[#allocation5 + $0x78] sm:$0xff]
    %v79 = vld [vmem:[%s2] sm:$0x1]
    %v81 = vlaneseq
    %v82 = vshrl.u32 %v81, 7
    %v83 = vsub.s32 0, %v82
    %v84 = vrot.slane %v79, %v83
    %86 = vmatprep.subr.mxu0 0.0
    %87 = vmatpush1.msra.mxu0 %v63
    %88 = vmatprep.subr.mxu0 0.0
    %89 = vmatpush1.msra.mxu0 %v64
    %90 = vmatprep.subr.mxu0 0.0
    %91 = vmatpush1.msra.mxu0 %v65
    %92 = vmatprep.subr.mxu0 0.0
    %93 = vmatpush1.msra.mxu0 %v66
    %94 = vmatprep.subr.mxu0 0.0
    %95 = vmatpush1.msra.mxu0 %v67
    %96 = vmatprep.subr.mxu0 0.0
    %97 = vmatpush1.msra.mxu0 %v68
    %98 = vmatprep.subr.mxu0 0.0
    %99 = vmatpush1.msra.mxu0 %v69
    %100 = vmatprep.subr.mxu0 0.0
    %101 = vmatpush1.msra.mxu0 %v70
    %102 = vmatprep.subr.mxu0 0.0
    %103 = vmatpush1.msra.mxu0 %v71
    %104 = vmatprep.subr.mxu0 0.0
    %105 = vmatpush1.msra.mxu0 %v72
    %106 = vmatprep.subr.mxu0 0.0
    %107 = vmatpush1.msra.mxu0 %v73
    %108 = vmatprep.subr.mxu0 0.0
    %109 = vmatpush1.msra.mxu0 %v74
    %110 = vmatprep.subr.mxu0 0.0
    %111 = vmatpush1.msra.mxu0 %v75
    %112 = vmatprep.subr.mxu0 0.0
    %113 = vmatpush1.msra.mxu0 %v76
    %114 = vmatprep.subr.mxu0 0.0
    %115 = vmatpush1.msra.mxu0 %v77
    %116 = vmatprep.subr.mxu0 0.0
    %117 = vmatpush1.msra.mxu0 %v78
    %118 = vmatprep.subr.mxu0 0.0
    %119 = vmatpush1.msra.mxu0 0.0
    %120 = vmatprep.subr.mxu0 0.0
    %121 = vmatpush1.msra.mxu0 0.0
    %122 = vmatprep.subr.mxu0 0.0
    %123 = vmatpush1.msra.mxu0 0.0
    %124 = vmatprep.subr.mxu0 0.0
    %125 = vmatpush1.msra.mxu0 0.0
    %126 = vmatprep.subr.mxu0 0.0
    %127 = vmatpush1.msra.mxu0 0.0
    %128 = vmatprep.subr.mxu0 0.0
    %129 = vmatpush1.msra.mxu0 0.0
    %130 = vmatprep.subr.mxu0 0.0
    %131 = vmatpush1.msra.mxu0 0.0
    %132 = vmatprep.subr.mxu0 0.0
    %133 = vmatpush1.msra.mxu0 0.0
    %134 = vmatprep.subr.mxu0 0.0
    %135 = vmatpush1.msra.mxu0 0.0
    %136 = vmatprep.subr.mxu0 0.0
    %137 = vmatpush1.msra.mxu0 0.0
    %138 = vmatprep.subr.mxu0 0.0
    %139 = vmatpush1.msra.mxu0 0.0
    %140 = vmatprep.subr.mxu0 0.0
    %141 = vmatpush1.msra.mxu0 0.0
    %142 = vmatprep.subr.mxu0 0.0
    %143 = vmatpush1.msra.mxu0 0.0
    %144 = vmatprep.subr.mxu0 0.0
    %145 = vmatpush1.msra.mxu0 0.0
    %146 = vmatprep.subr.mxu0 0.0
    %147 = vmatpush1.msra.mxu0 0.0
    %148 = vmatprep.subr.mxu0 0.0
    %149 = vmatpush1.msra.mxu0 0.0
    %150 = vmatprep.mubr.f32.mxu0 0.0
    %151 = vmatmul.mubr.f32.gmra.mrb[0].mxu0 %v62
    %v152 = vpop.f32.mrb[0].mxu0
    %v153 = vadd.f32 %v84, %v152
    %v154 = vpop.f32.mrb[0].mxu0
    %155 = vdwg.mxu0
    %v156 = vmax.f32 %v153, 0.0
    %v157 = vld [vmem:[#allocation7] sm:$0xff]
    %v158 = vld [vmem:[#allocation7 + $0x8] sm:$0xff]
    %v159 = vld [vmem:[#allocation7 + $0x10] sm:$0xff]
    %v160 = vld [vmem:[#allocation7 + $0x18] sm:$0xff]
    %v161 = vld [vmem:[#allocation7 + $0x20] sm:$0xff]
    %v162 = vld [vmem:[#allocation7 + $0x28] sm:$0xff]
    %v163 = vld [vmem:[#allocation7 + $0x30] sm:$0xff]
    %v164 = vld [vmem:[#allocation7 + $0x38] sm:$0xff]
    %v165 = vld [vmem:[#allocation7 + $0x40] sm:$0xff]
    %v166 = vld [vmem:[#allocation7 + $0x48] sm:$0xff]
    %v167 = vld [vmem:[#allocation7 + $0x50] sm:$0xff]
    %v168 = vld [vmem:[#allocation7 + $0x58] sm:$0xff]
    %v169 = vld [vmem:[#allocation7 + $0x60] sm:$0xff]
    %v170 = vld [vmem:[#allocation7 + $0x68] sm:$0xff]
    %v171 = vld [vmem:[#allocation7 + $0x70] sm:$0xff]
    %v172 = vld [vmem:[#allocation7 + $0x78] sm:$0xff]
    %v173 = vld [vmem:[%s4] sm:$0x1]
    %v175 = vlaneseq
    %v176 = vshrl.u32 %v175, 7
    %v177 = vsub.s32 0, %v176
    %v178 = vrot.slane %v173, %v177
    %180 = vmatprep.subr.mxu0 0.0
    %181 = vmatpush1.msra.mxu0 %v157
    %182 = vmatprep.subr.mxu0 0.0
    %183 = vmatpush1.msra.mxu0 %v158
    %184 = vmatprep.subr.mxu0 0.0
    %185 = vmatpush1.msra.mxu0 %v159
    %186 = vmatprep.subr.mxu0 0.0
    %187 = vmatpush1.msra.mxu0 %v160
    %188 = vmatprep.subr.mxu0 0.0
    %189 = vmatpush1.msra.mxu0 %v161
    %190 = vmatprep.subr.mxu0 0.0
    %191 = vmatpush1.msra.mxu0 %v162
    %192 = vmatprep.subr.mxu0 0.0
    %193 = vmatpush1.msra.mxu0 %v163
    %194 = vmatprep.subr.mxu0 0.0
    %195 = vmatpush1.msra.mxu0 %v164
    %196 = vmatprep.subr.mxu0 0.0
    %197 = vmatpush1.msra.mxu0 %v165
    %198 = vmatprep.subr.mxu0 0.0
    %199 = vmatpush1.msra.mxu0 %v166
    %200 = vmatprep.subr.mxu0 0.0
    %201 = vmatpush1.msra.mxu0 %v167
    %202 = vmatprep.subr.mxu0 0.0
    %203 = vmatpush1.msra.mxu0 %v168
    %204 = vmatprep.subr.mxu0 0.0
    %205 = vmatpush1.msra.mxu0 %v169
    %206 = vmatprep.subr.mxu0 0.0
    %207 = vmatpush1.msra.mxu0 %v170
    %208 = vmatprep.subr.mxu0 0.0
    %209 = vmatpush1.msra.mxu0 %v171
    %210 = vmatprep.subr.mxu0 0.0
    %211 = vmatpush1.msra.mxu0 %v172
    %212 = vmatprep.subr.mxu0 0.0
    %213 = vmatpush1.msra.mxu0 0.0
    %214 = vmatprep.subr.mxu0 0.0
    %215 = vmatpush1.msra.mxu0 0.0
    %216 = vmatprep.subr.mxu0 0.0
    %217 = vmatpush1.msra.mxu0 0.0
    %218 = vmatprep.subr.mxu0 0.0
    %219 = vmatpush1.msra.mxu0 0.0
    %220 = vmatprep.subr.mxu0 0.0
    %221 = vmatpush1.msra.mxu0 0.0
    %222 = vmatprep.subr.mxu0 0.0
    %223 = vmatpush1.msra.mxu0 0.0
    %224 = vmatprep.subr.mxu0 0.0
    %225 = vmatpush1.msra.mxu0 0.0
    %226 = vmatprep.subr.mxu0 0.0
    %227 = vmatpush1.msra.mxu0 0.0
    %228 = vmatprep.subr.mxu0 0.0
    %229 = vmatpush1.msra.mxu0 0.0
    %230 = vmatprep.subr.mxu0 0.0
    %231 = vmatpush1.msra.mxu0 0.0
    %232 = vmatprep.subr.mxu0 0.0
    %233 = vmatpush1.msra.mxu0 0.0
    %234 = vmatprep.subr.mxu0 0.0
    %235 = vmatpush1.msra.mxu0 0.0
    %236 = vmatprep.subr.mxu0 0.0
    %237 = vmatpush1.msra.mxu0 0.0
    %238 = vmatprep.subr.mxu0 0.0
    %239 = vmatpush1.msra.mxu0 0.0
    %240 = vmatprep.subr.mxu0 0.0
    %241 = vmatpush1.msra.mxu0 0.0
    %242 = vmatprep.subr.mxu0 0.0
    %243 = vmatpush1.msra.mxu0 0.0
    %244 = vmatprep.mubr.f32.mxu0 0.0
    %245 = vmatmul.mubr.f32.gmra.mrb[0].mxu0 %v156
    %v246 = vpop.f32.mrb[0].mxu0
    %v247 = vadd.f32 %v178, %v246
    %v248 = vpop.f32.mrb[0].mxu0
    %249 = vdwg.mxu0
    %v250 = vxor.u32 %v247, 2147483648
    %v251 = vmul.f32 %v250, 1.442695
    %v252 = vpow.pop %v251
    %v253 = vadd.f32 %v252, 1.0
    %v254 = vrcp.pop %v253
    %v255 = vmul.f32 1.0, %v254
    %256 = vst [vmem:[#allocation8] sm:$0xff] %v255
    // Predicated region
    $region34: #{netcheck_forward_prepped.1} parent=1 // pred_check
      _
    $region35: #{netcheck_forward_prepped.1} parent=1 // pred_check_branch
      %258 = sbr.rel (0) target = $region37
    $region36: #{netcheck_forward_prepped.1} parent=1 // pred_region
      %s260 = ssub.s32 128, 32
      %261 = vsyncadd [#allocation4], %s260
      %s262 = sshll.u32 [#allocation8], 4
      %s263 = int_to_ptr.vmem [resolvable:$true] %s262
      %268 = dma.vmem_to_hbm [thread:$0]  %s263, 32, %s5, [#allocation4], 32, 32, 2
    $region37: #{netcheck_forward_prepped.1} parent=1 // pred_fallthru
      _
    // Predicated region
    $region38: #{netcheck_forward_prepped.1} parent=1 // pred_check
      _
    $region39: #{netcheck_forward_prepped.1} parent=1 // pred_check_branch
      %270 = sbr.rel (0) target = $region41
    $region40: #{netcheck_forward_prepped.1} parent=1 // pred_region
      %271 = dma.done [#allocation4], 128
    $region41: #{netcheck_forward_prepped.1} parent=1 // pred_fallthru
      _
    %272 = vsyncpa [#allocation3], 1
    %273 = vsyncpa [#allocation6], 1
    %274 = vsyncpa [#allocation4], 1

</llo_original>
